<compile_context>
chip_gen: v6e
topology: v6e:2x2x1
jax: 0.10.0
libtpu: 0.0.40
codegen_flags: <defaults>
</compile_context>

<pallas_src>
import functools

import jax
import jax.numpy as jnp
from jax import lax
from jax.experimental import pallas as pl
from jax.experimental.pallas import tpu as pltpu

LANE = 128
SUBLANE = 8


def _round_up(x, m):
    return (x + m - 1) // m * m


def _cdiv(a, b):
    return -(-a // b)


def _sublane_gran(dtype):
    # Sublane granularity of the second-minor dim: 8 for 32-bit, 16 for bf16,
    # 32 for 8-bit dtypes.
    return SUBLANE * max(1, 4 // jnp.dtype(dtype).itemsize)


def _dice_partial_kernel(x_ref, t_ref, inter_ref, denom_ref,
                         inter_acc, denom_acc,
                         *, block_rows, chunk_rows, n_chunks, steps_per_part,
                         full_rows, valid_rows, rem_cols):
    part = pl.program_id(0)   # parallel axis (v7x dual-TC split; 1 by default)
    step = pl.program_id(1)   # sequential reduction axis

    @pl.when(step == 0)
    def _init():
        inter_acc[...] = jnp.zeros_like(inter_acc)
        denom_acc[...] = jnp.zeros_like(denom_acc)

    # NOTE: int32 *row* arithmetic; safe for < 2**31 rows (< 2**38 elements).
    logical_block = part * steps_per_part + step
    base_row = logical_block * block_rows

    def _load_chunk(off):
        xs = x_ref[pl.ds(off, chunk_rows), :].astype(jnp.float32)
        ts = t_ref[pl.ds(off, chunk_rows), :].astype(jnp.float32)
        # sigmoid(x) == 0.5*tanh(0.5*x) + 0.5 : tanh runs on the EUP slot, so
        # no abs / divide / compare / select on the VALU.
        sig = 0.5 * jnp.tanh(0.5 * xs) + 0.5
        return sig, ts

    def _accumulate(sig, ts):
        # Vreg-wise accumulation into resident (8, 128) scratch; sum(s)+sum(t)
        # shares one accumulator stream (only the sum is needed downstream).
        inter_acc[...] += jnp.sum((sig * ts).reshape(-1, SUBLANE, LANE), axis=0)
        denom_acc[...] += jnp.sum((sig + ts).reshape(-1, SUBLANE, LANE), axis=0)

    def _chunk(c, carry):
        off = pl.multiple_of(c * chunk_rows, chunk_rows)
        start = base_row + c * chunk_rows

        # Fast path: chunk lies entirely inside the valid data -> no masking.
        @pl.when(start + chunk_rows <= full_rows)
        def _full():
            sig, ts = _load_chunk(off)
            _accumulate(sig, ts)

        # Boundary chunk: contains the ragged tail and/or edge-block garbage
        # rows -> mask per element.  Fully-out-of-range chunks (including the
        # clamped overhang iterations when n_parts > 1) hit neither branch and
        # contribute nothing.
        @pl.when(jnp.logical_and(start + chunk_rows > full_rows,
                                 start < valid_rows))
        def _boundary():
            sig, ts = _load_chunk(off)
            rid = start + lax.broadcasted_iota(jnp.int32, (chunk_rows, LANE), 0)
            cid = lax.broadcasted_iota(jnp.int32, (chunk_rows, LANE), 1)
            valid = jnp.logical_or(
                rid < full_rows,
                jnp.logical_and(rid == full_rows, cid < rem_cols))
            _accumulate(jnp.where(valid, sig, 0.0), jnp.where(valid, ts, 0.0))

        return carry

    lax.fori_loop(0, n_chunks, _chunk, 0)

    @pl.when(step == pl.num_programs(1) - 1)
    def _finalize():
        inter_ref[...] = jnp.sum(inter_acc[...], axis=0, keepdims=True)
        denom_ref[...] = jnp.sum(denom_acc[...], axis=0, keepdims=True)


def dice_loss(inputs, targets, smooth=1.0, *,
              block_rows=8192, chunk_rows=512, n_parts=1, core_parallel=False):
    """Pallas equivalent of DiceLoss.forward(inputs, targets, smooth)."""
    x = inputs.reshape(-1)     # like .view(-1); native dtype streamed from HBM
    t = targets.reshape(-1)
    n = int(x.shape[0])
    assert int(t.shape[0]) == n, "inputs/targets must have the same numel"

    # Lane-fold the flat view to a (rows, 128) slab.  Free when n % 128 == 0;
    # otherwise a < 128-element pad (the kernel masks the tail).
    if n % LANE != 0:
        pad = LANE - n % LANE
        x = jnp.pad(x, (0, pad))
        t = jnp.pad(t, (0, pad))
    rows = x.shape[0] // LANE
    x2 = x.reshape(rows, LANE)
    t2 = t.reshape(rows, LANE)

    gran = max(_sublane_gran(x2.dtype), _sublane_gran(t2.dtype))

    # Largest block size (in rows) that does not exceed the data, in sublane
    # granules; tiny inputs fall back to a single (edge-padded) block.
    data_cap = (rows // gran) * gran if rows >= gran else gran

    # Inner compute-chunk rows: bounds elementwise intermediates in VMEM
    # regardless of how large the DMA block is.
    chunk_rows = max(gran, min(_round_up(chunk_rows, gran), data_cap))

    # DMA block rows: as large as possible (amortizes the ~0.35 us grid-step
    # overhead), a whole multiple of chunk_rows, no larger than the data cap.
    block_rows = max(chunk_rows, _round_up(block_rows, chunk_rows))
    block_rows = max(chunk_rows,
                     min(block_rows, (data_cap // chunk_rows) * chunk_rows))
    n_chunks = block_rows // chunk_rows

    blocks_total = _cdiv(rows, block_rows)
    n_parts = max(1, min(int(n_parts), blocks_total))
    steps_per_part = _cdiv(blocks_total, n_parts)

    full_rows = n // LANE          # rows completely filled with valid elements
    valid_rows = _cdiv(n, LANE)    # rows containing at least one valid element
    rem_cols = n % LANE            # valid lanes in the (optional) partial row

    def in_index_map(p, s):
        # Clamp overhang iterations (uneven split when n_parts > 1) to the last
        # valid block; the kernel skips their accumulation entirely.
        return (jnp.minimum(p * steps_per_part + s, blocks_total - 1), 0)

    kernel = functools.partial(
        _dice_partial_kernel,
        block_rows=block_rows, chunk_rows=chunk_rows, n_chunks=n_chunks,
        steps_per_part=steps_per_part,
        full_rows=full_rows, valid_rows=valid_rows, rem_cols=rem_cols)

    # Raise scoped VMEM only when the double-buffered blocks need it (v5e's
    # default scoped limit is 16 MiB); cap well below v7x's 64 MiB physical.
    block_bytes = block_rows * LANE * (x2.dtype.itemsize + t2.dtype.itemsize)
    vmem_needed = 2 * block_bytes + 8 * chunk_rows * LANE * 4 + (1 << 20)
    vmem_limit = None
    if vmem_needed > 16 * 2**20:
        vmem_limit = int(min(56 * 2**20, max(32 * 2**20, vmem_needed)))

    if core_parallel:
        # v7x: pin the leading grid axis onto the two TensorCores.
        dims = (getattr(pltpu, "CORE_PARALLEL", "parallel"),
                getattr(pltpu, "ARBITRARY", "arbitrary"))
    else:
        dims = ("parallel", "arbitrary")

    inter_p, denom_p = pl.pallas_call(
        kernel,
        out_shape=(
            jax.ShapeDtypeStruct((n_parts, LANE), jnp.float32),
            jax.ShapeDtypeStruct((n_parts, LANE), jnp.float32),
        ),
        grid_spec=pltpu.PrefetchScalarGridSpec(
            num_scalar_prefetch=0,
            grid=(n_parts, steps_per_part),
            in_specs=[
                pl.BlockSpec((block_rows, LANE), in_index_map),
                pl.BlockSpec((block_rows, LANE), in_index_map),
            ],
            out_specs=[
                pl.BlockSpec((1, LANE), lambda p, s: (p, 0)),
                pl.BlockSpec((1, LANE), lambda p, s: (p, 0)),
            ],
            scratch_shapes=[
                pltpu.VMEM((SUBLANE, LANE), jnp.float32),
                pltpu.VMEM((SUBLANE, LANE), jnp.float32),
            ],
        ),
        compiler_params=pltpu.CompilerParams(
            dimension_semantics=dims,
            vmem_limit_bytes=vmem_limit,
        ),
    )(x2, t2)

    # Tiny final scalar combine in plain JAX.
    intersection = jnp.sum(inter_p)
    denom = jnp.sum(denom_p)
    smooth = jnp.float32(smooth)
    return 1.0 - (2.0 * intersection + smooth) / (denom + smooth)


def dice_loss_ref(inputs, targets, smooth=1.0):
    s = jax.nn.sigmoid(inputs.reshape(-1).astype(jnp.float32))
    t = targets.reshape(-1).astype(jnp.float32)
    inter = jnp.sum(s * t)
    return 1.0 - (2.0 * inter + smooth) / (jnp.sum(s) + jnp.sum(t) + smooth)


if __name__ == "__main__":
    key = jax.random.PRNGKey(0)
    k_in, k_tg, k_in2, k_tg2 = jax.random.split(key, 4)

    # Primary check: f32 NCHW logits + binary mask targets (2, 4, 16, 16).
    inputs = jax.random.normal(k_in, (2, 4, 16, 16), dtype=jnp.float32)
    targets = jax.random.bernoulli(k_tg, 0.5, (2, 4, 16, 16)).astype(jnp.float32)

    loss = jax.block_until_ready(dice_loss(inputs, targets, smooth=1.0))
    ref = dice_loss_ref(inputs, targets, smooth=1.0)
    assert jnp.allclose(loss, ref, atol=1e-5, rtol=1e-5), (loss, ref)

    # Secondary check: bf16 logits with a ragged row count — exercises the
    # gated boundary-chunk mask, the native-dtype path and partial edge blocks.
    inputs2 = jax.random.normal(k_in2, (2, 4, 20, 16), dtype=jnp.bfloat16)
    targets2 = jax.random.bernoulli(k_tg2, 0.5, (2, 4, 20, 16)).astype(jnp.float32)

    loss2 = jax.block_until_ready(dice_loss(inputs2, targets2, smooth=1.0))
    ref2 = dice_loss_ref(inputs2.astype(jnp.float32), targets2, smooth=1.0)
    assert jnp.allclose(loss2, ref2, atol=1e-4, rtol=1e-4), (loss2, ref2)

    print("KERNEL_OK")
</pallas_src>

<mosaic_0001>
module attributes {stable_mosaic.version = 11 : i64} {
  func.func @_dice_partial_kernel(%arg0: i32, %arg1: i32, %arg2: memref<16x128xf32, #tpu.memory_space<vmem>>, %arg3: memref<16x128xf32, #tpu.memory_space<vmem>>, %arg4: memref<1x128xf32, #tpu.memory_space<vmem>>, %arg5: memref<1x128xf32, #tpu.memory_space<vmem>>, %arg6: memref<8x128xf32, #tpu.memory_space<vmem>>, %arg7: memref<8x128xf32, #tpu.memory_space<vmem>>) attributes {dimension_semantics = [#tpu.dimension_semantics<parallel>, #tpu.dimension_semantics<arbitrary>], iteration_bounds = array<i64: 1, 1>, scalar_prefetch = 0 : i64, scratch_operands = 2 : i64, tpu.core_type = #tpu.core_type<tc>, window_params = [{transform_indices = @transform_0, window_bounds = array<i64: 16, 128>}, {transform_indices = @transform_1, window_bounds = array<i64: 16, 128>}, {transform_indices = @transform_2, window_bounds = array<i64: 1, 128>}, {transform_indices = @transform_3, window_bounds = array<i64: 1, 128>}]} {
    %c0_i32 = arith.constant 0 : i32
    %0 = arith.cmpi eq, %arg1, %c0_i32 : i32
    %1 = arith.extui %0 : i1 to i32
    %c0_i32_0 = arith.constant 0 : i32
    %2 = arith.cmpi ne, %1, %c0_i32_0 : i32
    scf.if %2 {
      %cst = arith.constant 0.000000e+00 : f32
      %23 = vector.broadcast %cst : f32 to vector<8x128xf32>
      %c0 = arith.constant 0 : index
      %c0_14 = arith.constant 0 : index
      %24 = vector.load %arg6[%c0, %c0_14] : memref<8x128xf32, #tpu.memory_space<vmem>>, vector<8x128xf32>
      tpu.vector_store %arg6[%c0, %c0_14], %23 {strides = array<i32>} : memref<8x128xf32, #tpu.memory_space<vmem>>, vector<8x128xf32>,
      %cst_15 = arith.constant 0.000000e+00 : f32
      %25 = vector.broadcast %cst_15 : f32 to vector<8x128xf32>
      %c0_16 = arith.constant 0 : index
      %c0_17 = arith.constant 0 : index
      %26 = vector.load %arg7[%c0_16, %c0_17] : memref<8x128xf32, #tpu.memory_space<vmem>>, vector<8x128xf32>
      tpu.vector_store %arg7[%c0_16, %c0_17], %25 {strides = array<i32>} : memref<8x128xf32, #tpu.memory_space<vmem>>, vector<8x128xf32>,
    } else {
    }
    %c1_i32 = arith.constant 1 : i32
    %3 = arith.muli %arg0, %c1_i32 : i32
    %4 = arith.addi %3, %arg1 : i32
    %c16_i32 = arith.constant 16 : i32
    %5 = arith.muli %4, %c16_i32 : i32
    %c0_i32_1 = arith.constant 0 : i32
    %c16_i32_2 = arith.constant 16 : i32
    %6 = arith.muli %c0_i32_1, %c16_i32_2 : i32
    %7 = tpu.assume_multiple %6, 16 : i32
    %c16_i32_3 = arith.constant 16 : i32
    %8 = arith.muli %c0_i32_1, %c16_i32_3 : i32
    %9 = arith.addi %5, %8 : i32
    %c16_i32_4 = arith.constant 16 : i32
    %10 = arith.addi %9, %c16_i32_4 : i32
    %c16_i32_5 = arith.constant 16 : i32
    %11 = arith.cmpi sle, %10, %c16_i32_5 : i32
    %12 = arith.extui %11 : i1 to i32
    %c0_i32_6 = arith.constant 0 : i32
    %13 = arith.cmpi ne, %12, %c0_i32_6 : i32
    scf.if %13 {
      %23 = arith.index_cast %7 : i32 to index
      %c0 = arith.constant 0 : index
      %24 = vector.load %arg2[%23, %c0] : memref<16x128xf32, #tpu.memory_space<vmem>>, vector<16x128xf32>
      %25 = arith.index_cast %7 : i32 to index
      %c0_14 = arith.constant 0 : index
      %26 = vector.load %arg3[%25, %c0_14] : memref<16x128xf32, #tpu.memory_space<vmem>>, vector<16x128xf32>
      %cst = arith.constant 5.000000e-01 : f32
      %27 = vector.broadcast %cst : f32 to vector<16x128xf32>
      %28 = arith.mulf %27, %24 : vector<16x128xf32>
      %29 = math.tanh %28 : vector<16x128xf32>
      %cst_15 = arith.constant 5.000000e-01 : f32
      %30 = vector.broadcast %cst_15 : f32 to vector<16x128xf32>
      %31 = arith.mulf %30, %29 : vector<16x128xf32>
      %cst_16 = arith.constant 5.000000e-01 : f32
      %32 = vector.broadcast %cst_16 : f32 to vector<16x128xf32>
      %33 = arith.addf %31, %32 : vector<16x128xf32>
      %c0_17 = arith.constant 0 : index
      %c0_18 = arith.constant 0 : index
      %34 = vector.load %arg6[%c0_17, %c0_18] : memref<8x128xf32, #tpu.memory_space<vmem>>, vector<8x128xf32>
      %35 = arith.mulf %33, %26 : vector<16x128xf32>
      %36 = vector.shape_cast %35 : vector<16x128xf32> to vector<2x8x128xf32>
      %cst_19 = arith.constant dense<0.000000e+00> : vector<8x128xf32>
      %37 = vector.multi_reduction <add>, %36, %cst_19 [0] : vector<2x8x128xf32> to vector<8x128xf32>
      %38 = arith.addf %34, %37 : vector<8x128xf32>
      %c0_20 = arith.constant 0 : index
      %c0_21 = arith.constant 0 : index
      %39 = vector.load %arg6[%c0_20, %c0_21] : memref<8x128xf32, #tpu.memory_space<vmem>>, vector<8x128xf32>
      tpu.vector_store %arg6[%c0_20, %c0_21], %38 {strides = array<i32>} : memref<8x128xf32, #tpu.memory_space<vmem>>, vector<8x128xf32>,
      %c0_22 = arith.constant 0 : index
      %c0_23 = arith.constant 0 : index
      %40 = vector.load %arg7[%c0_22, %c0_23] : memref<8x128xf32, #tpu.memory_space<vmem>>, vector<8x128xf32>
      %41 = arith.addf %33, %26 : vector<16x128xf32>
      %42 = vector.shape_cast %41 : vector<16x128xf32> to vector<2x8x128xf32>
      %cst_24 = arith.constant dense<0.000000e+00> : vector<8x128xf32>
      %43 = vector.multi_reduction <add>, %42, %cst_24 [0] : vector<2x8x128xf32> to vector<8x128xf32>
      %44 = arith.addf %40, %43 : vector<8x128xf32>
      %c0_25 = arith.constant 0 : index
      %c0_26 = arith.constant 0 : index
      %45 = vector.load %arg7[%c0_25, %c0_26] : memref<8x128xf32, #tpu.memory_space<vmem>>, vector<8x128xf32>
      tpu.vector_store %arg7[%c0_25, %c0_26], %44 {strides = array<i32>} : memref<8x128xf32, #tpu.memory_space<vmem>>, vector<8x128xf32>,
    } else {
    }
    %c16_i32_7 = arith.constant 16 : i32
    %14 = arith.addi %9, %c16_i32_7 : i32
    %c16_i32_8 = arith.constant 16 : i32
    %15 = arith.cmpi sgt, %14, %c16_i32_8 : i32
    %c16_i32_9 = arith.constant 16 : i32
    %16 = arith.cmpi slt, %9, %c16_i32_9 : i32
    %17 = arith.andi %15, %16 : i1
    %18 = arith.extui %17 : i1 to i32
    %c0_i32_10 = arith.constant 0 : i32
    %19 = arith.cmpi ne, %18, %c0_i32_10 : i32
    scf.if %19 {
      %23 = arith.index_cast %7 : i32 to index
      %c0 = arith.constant 0 : index
      %24 = vector.load %arg2[%23, %c0] : memref<16x128xf32, #tpu.memory_space<vmem>>, vector<16x128xf32>
      %25 = arith.index_cast %7 : i32 to index
      %c0_14 = arith.constant 0 : index
      %26 = vector.load %arg3[%25, %c0_14] : memref<16x128xf32, #tpu.memory_space<vmem>>, vector<16x128xf32>
      %cst = arith.constant 5.000000e-01 : f32
      %27 = vector.broadcast %cst : f32 to vector<16x128xf32>
      %28 = arith.mulf %27, %24 : vector<16x128xf32>
      %29 = math.tanh %28 : vector<16x128xf32>
      %cst_15 = arith.constant 5.000000e-01 : f32
      %30 = vector.broadcast %cst_15 : f32 to vector<16x128xf32>
      %31 = arith.mulf %30, %29 : vector<16x128xf32>
      %cst_16 = arith.constant 5.000000e-01 : f32
      %32 = vector.broadcast %cst_16 : f32 to vector<16x128xf32>
      %33 = arith.addf %31, %32 : vector<16x128xf32>
      %34 = tpu.iota {dimensions = array<i32: 0>} : vector<16x128xi32>
      %35 = vector.broadcast %9 : i32 to vector<16x128xi32>
      %36 = arith.addi %35, %34 : vector<16x128xi32>
      %37 = tpu.iota {dimensions = array<i32: 1>} : vector<16x128xi32>
      %c16_i32_17 = arith.constant 16 : i32
      %38 = vector.broadcast %c16_i32_17 : i32 to vector<16x128xi32>
      %39 = arith.cmpi slt, %36, %38 : vector<16x128xi32>
      %c16_i32_18 = arith.constant 16 : i32
      %40 = vector.broadcast %c16_i32_18 : i32 to vector<16x128xi32>
      %41 = arith.cmpi eq, %36, %40 : vector<16x128xi32>
      %c0_i32_19 = arith.constant 0 : i32
      %42 = vector.broadcast %c0_i32_19 : i32 to vector<16x128xi32>
      %43 = arith.cmpi slt, %37, %42 : vector<16x128xi32>
      %44 = arith.andi %41, %43 : vector<16x128xi1>
      %45 = arith.ori %39, %44 : vector<16x128xi1>
      %cst_20 = arith.constant 0.000000e+00 : f32
      %46 = vector.broadcast %cst_20 : f32 to vector<16x128xf32>
      %47 = arith.select %45, %33, %46 : vector<16x128xi1>, vector<16x128xf32>
      %cst_21 = arith.constant 0.000000e+00 : f32
      %48 = vector.broadcast %cst_21 : f32 to vector<16x128xf32>
      %49 = arith.select %45, %26, %48 : vector<16x128xi1>, vector<16x128xf32>
      %c0_22 = arith.constant 0 : index
      %c0_23 = arith.constant 0 : index
      %50 = vector.load %arg6[%c0_22, %c0_23] : memref<8x128xf32, #tpu.memory_space<vmem>>, vector<8x128xf32>
      %51 = arith.mulf %47, %49 : vector<16x128xf32>
      %52 = vector.shape_cast %51 : vector<16x128xf32> to vector<2x8x128xf32>
      %cst_24 = arith.constant dense<0.000000e+00> : vector<8x128xf32>
      %53 = vector.multi_reduction <add>, %52, %cst_24 [0] : vector<2x8x128xf32> to vector<8x128xf32>
      %54 = arith.addf %50, %53 : vector<8x128xf32>
      %c0_25 = arith.constant 0 : index
      %c0_26 = arith.constant 0 : index
      %55 = vector.load %arg6[%c0_25, %c0_26] : memref<8x128xf32, #tpu.memory_space<vmem>>, vector<8x128xf32>
      tpu.vector_store %arg6[%c0_25, %c0_26], %54 {strides = array<i32>} : memref<8x128xf32, #tpu.memory_space<vmem>>, vector<8x128xf32>,
      %c0_27 = arith.constant 0 : index
      %c0_28 = arith.constant 0 : index
      %56 = vector.load %arg7[%c0_27, %c0_28] : memref<8x128xf32, #tpu.memory_space<vmem>>, vector<8x128xf32>
      %57 = arith.addf %47, %49 : vector<16x128xf32>
      %58 = vector.shape_cast %57 : vector<16x128xf32> to vector<2x8x128xf32>
      %cst_29 = arith.constant dense<0.000000e+00> : vector<8x128xf32>
      %59 = vector.multi_reduction <add>, %58, %cst_29 [0] : vector<2x8x128xf32> to vector<8x128xf32>
      %60 = arith.addf %56, %59 : vector<8x128xf32>
      %c0_30 = arith.constant 0 : index
      %c0_31 = arith.constant 0 : index
      %61 = vector.load %arg7[%c0_30, %c0_31] : memref<8x128xf32, #tpu.memory_space<vmem>>, vector<8x128xf32>
      tpu.vector_store %arg7[%c0_30, %c0_31], %60 {strides = array<i32>} : memref<8x128xf32, #tpu.memory_space<vmem>>, vector<8x128xf32>,
    } else {
    }
    %c1_i32_11 = arith.constant 1 : i32
    %c0_i32_12 = arith.constant 0 : i32
    %20 = arith.cmpi eq, %arg1, %c0_i32_12 : i32
    %21 = arith.extui %20 : i1 to i32
    %c0_i32_13 = arith.constant 0 : i32
    %22 = arith.cmpi ne, %21, %c0_i32_13 : i32
    scf.if %22 {
      %c0 = arith.constant 0 : index
      %c0_14 = arith.constant 0 : index
      %23 = vector.load %arg6[%c0, %c0_14] : memref<8x128xf32, #tpu.memory_space<vmem>>, vector<8x128xf32>
      %cst = arith.constant dense<0.000000e+00> : vector<128xf32>
      %24 = vector.multi_reduction <add>, %23, %cst [0] : vector<8x128xf32> to vector<128xf32>
      %25 = vector.shape_cast %24 : vector<128xf32> to vector<1x128xf32>
      %c0_15 = arith.constant 0 : index
      %c0_16 = arith.constant 0 : index
      %26 = vector.load %arg4[%c0_15, %c0_16] : memref<1x128xf32, #tpu.memory_space<vmem>>, vector<1x128xf32>
      tpu.vector_store %arg4[%c0_15, %c0_16], %25 {strides = array<i32>} : memref<1x128xf32, #tpu.memory_space<vmem>>, vector<1x128xf32>,
      %c0_17 = arith.constant 0 : index
      %c0_18 = arith.constant 0 : index
      %27 = vector.load %arg7[%c0_17, %c0_18] : memref<8x128xf32, #tpu.memory_space<vmem>>, vector<8x128xf32>
      %cst_19 = arith.constant dense<0.000000e+00> : vector<128xf32>
      %28 = vector.multi_reduction <add>, %27, %cst_19 [0] : vector<8x128xf32> to vector<128xf32>
      %29 = vector.shape_cast %28 : vector<128xf32> to vector<1x128xf32>
      %c0_20 = arith.constant 0 : index
      %c0_21 = arith.constant 0 : index
      %30 = vector.load %arg5[%c0_20, %c0_21] : memref<1x128xf32, #tpu.memory_space<vmem>>, vector<1x128xf32>
      tpu.vector_store %arg5[%c0_20, %c0_21], %29 {strides = array<i32>} : memref<1x128xf32, #tpu.memory_space<vmem>>, vector<1x128xf32>,
    } else {
    }
    return
  }
  func.func @transform_0(%arg0: i32, %arg1: i32) -> (i32, i32) {
    %c1_i32 = arith.constant 1 : i32
    %0 = arith.muli %arg0, %c1_i32 : i32
    %1 = arith.addi %0, %arg1 : i32
    %c0_i32 = arith.constant 0 : i32
    %2 = arith.minsi %1, %c0_i32 : i32
    %c0_i32_0 = arith.constant 0 : i32
    %c0_i32_1 = arith.constant 0 : i32
    return %2, %c0_i32_0 : i32, i32
  }
  func.func @transform_1(%arg0: i32, %arg1: i32) -> (i32, i32) {
    %c1_i32 = arith.constant 1 : i32
    %0 = arith.muli %arg0, %c1_i32 : i32
    %1 = arith.addi %0, %arg1 : i32
    %c0_i32 = arith.constant 0 : i32
    %2 = arith.minsi %1, %c0_i32 : i32
    %c0_i32_0 = arith.constant 0 : i32
    %c0_i32_1 = arith.constant 0 : i32
    return %2, %c0_i32_0 : i32, i32
  }
  func.func @transform_2(%arg0: i32, %arg1: i32) -> (i32, i32) {
    %c0_i32 = arith.constant 0 : i32
    %c0_i32_0 = arith.constant 0 : i32
    return %arg0, %c0_i32 : i32, i32
  }
  func.func @transform_3(%arg0: i32, %arg1: i32) -> (i32, i32) {
    %c0_i32 = arith.constant 0 : i32
    %c0_i32_0 = arith.constant 0 : i32
    return %arg0, %c0_i32 : i32, i32
  }
}

</mosaic_0001>

<llo_original>
// kernel: tpu_custom_call.1
$region0: #{tpu_custom_call.1}
  #allocation0 [shape = 'u32[]', space=smem, size = 0x4, offset = 0x4, fixed_abs, tag = 'smem constant byte address 0x4 - core index']
  #allocation1 [shape = 'u32[144,128]{1,0:T(1,128)}', space=vmem, size = 0x12000, scoped, tag = 'internal scratch']
  #allocation2 [shape = 'f32[8,128]{1,0:T(8,128)}', space=vmem, size = 0x1000, scoped, tag = 'scratch operand']
  #allocation3 [shape = 'f32[8,128]{1,0:T(8,128)}', space=vmem, size = 0x1000, scoped, tag = 'scratch operand']
  %s0 = inlined_call_operand.hbm [shape: f32[16,128], index: 0, kind: input, shape index: {}]
  %s1 = inlined_call_operand.hbm [shape: f32[16,128], index: 1, kind: input, shape index: {}]
  %s2 = inlined_call_operand.hbm [shape: f32[1,128], index: 2, kind: output, shape index: {0}]
  %s3 = inlined_call_operand.hbm [shape: f32[1,128], index: 3, kind: output, shape index: {1}]
  %4 = xla_tuple %s2, %s3
  %s5 = sld [smem:[#allocation0]]
  $region50: #{tpu_custom_call.1} parent=0
    _
  %s7 = ssub.s32 1, %s5
  %s8 = scalar_select 0, %s7, %s5
  $region1: #{tpu_custom_call.1} parent=0
    #allocation4 [shape = 'u8[8192]{0}', space=vmem, size = 0x2000, scoped, tag = 'input window, operand 0, single buffered']
    #allocation5 [shape = 's32[1]{0}', space=sflag, size = 0x4, scoped, tag = 'scoped memory for tpu_custom_call.1']
    #allocation6 [shape = 's32[1]{0}', space=sflag, size = 0x4, scoped, tag = 'scoped memory for tpu_custom_call.1']
    #allocation7 [shape = 'u8[8192]{0}', space=vmem, size = 0x2000, scoped, tag = 'input window, operand 1, single buffered']
    #allocation8 [shape = 's32[1]{0}', space=sflag, size = 0x4, scoped, tag = 'scoped memory for tpu_custom_call.1']
    #allocation9 [shape = 'u8[512]{0}', space=vmem, size = 0x400, scoped, tag = 'output window, operand 0, single buffered']
    #allocation10 [shape = 'u8[512]{0}', space=vmem, size = 0x400, scoped, tag = 'output window, operand 1, single buffered']
    #allocation11 [shape = 's32[1]{0}', space=sflag, size = 0x4, scoped, tag = 'scoped memory for tpu_custom_call.1']
    %9 = vsyncpa [#allocation5], 0
    %10 = vsyncpa [#allocation8], 0
    %11 = vsyncpa [#allocation6], 0
    %12 = vsyncpa [#allocation11], 0
    // Predicated region
    $region2: #{tpu_custom_call.1} parent=1 // pred_check
      _
    $region3: #{tpu_custom_call.1} parent=1 // pred_check_branch
      %14 = sbr.rel (0) target = $region5
    $region4: #{tpu_custom_call.1} parent=1 // pred_region
      %s15 = sadd.s32 0, 0
      %p16 = scmp.lt.s32.totalorder %s15, 0
      %s17 = scalar_select %p16, %s15, 0
      %s18 = smul.u32 2, %s17
      %s20 = ssub.s32 256, 256
      %21 = vsyncadd [#allocation5], %s20
      %s22 = smul.addr %s18, 128
      %s23 = scalar_lea.hbm %s0, %s22
      %s24 = sshll.u32 [#allocation4], 4
      %s25 = int_to_ptr.vmem [resolvable:$true] %s24
      %30 = dma.hbm_to_vmem [thread:$0]  %s23, 256, %s25, [#allocation5], 128, 128, 8
    $region5: #{tpu_custom_call.1} parent=1 // pred_fallthru
      _
    // Predicated region
    $region6: #{tpu_custom_call.1} parent=1 // pred_check
      _
    $region7: #{tpu_custom_call.1} parent=1 // pred_check_branch
      %32 = sbr.rel (0) target = $region9
    $region8: #{tpu_custom_call.1} parent=1 // pred_region
      %s33 = sadd.s32 0, 0
      %p34 = scmp.lt.s32.totalorder %s33, 0
      %s35 = scalar_select %p34, %s33, 0
      %s36 = smul.u32 2, %s35
      %s38 = ssub.s32 256, 256
      %39 = vsyncadd [#allocation8], %s38
      %s40 = smul.addr %s36, 128
      %s41 = scalar_lea.hbm %s1, %s40
      %s42 = sshll.u32 [#allocation7], 4
      %s43 = int_to_ptr.vmem [resolvable:$true] %s42
      %48 = dma.hbm_to_vmem [thread:$0]  %s41, 256, %s43, [#allocation8], 128, 128, 8
    $region9: #{tpu_custom_call.1} parent=1 // pred_fallthru
      _
    // Predicated region
    $region10: #{tpu_custom_call.1} parent=1 // pred_check
      _
    $region11: #{tpu_custom_call.1} parent=1 // pred_check_branch
      %50 = sbr.rel (0) target = $region13
    $region12: #{tpu_custom_call.1} parent=1 // pred_region
      %51 = dma.done [#allocation5], 256
    $region13: #{tpu_custom_call.1} parent=1 // pred_fallthru
      _
    // Predicated region
    $region14: #{tpu_custom_call.1} parent=1 // pred_check
      _
    $region15: #{tpu_custom_call.1} parent=1 // pred_check_branch
      %53 = sbr.rel (0) target = $region17
    $region16: #{tpu_custom_call.1} parent=1 // pred_region
      %54 = dma.done [#allocation8], 256
    $region17: #{tpu_custom_call.1} parent=1 // pred_fallthru
      _
    %s55 = sadd.s32 0, 0
    %p56 = scmp.lt.s32.totalorder %s55, 0
    %s57 = scalar_select %p56, %s55, 0
    %s58 = smul.u32 2, %s57
    %s59 = sadd.s32 0, 0
    %p60 = scmp.lt.s32.totalorder %s59, 0
    %s61 = scalar_select %p60, %s59, 0
    %s62 = smul.u32 2, %s61
    %p63 = scmp.eq.s32.totalorder 0, 0
    // Predicated region
    $region18: #{tpu_custom_call.1} parent=1 // pred_check
      %p64 = pneg %p63
    $region19: #{tpu_custom_call.1} parent=1 // pred_check_branch
      %66 = sbr.rel (%p64) target = $region21
    $region20: #{tpu_custom_call.1} parent=1 // pred_region
      %67 = vst [vmem:[#allocation2] sm:$0xff] 0.0
      %68 = vst [vmem:[#allocation3] sm:$0xff] 0.0
    $region21: #{tpu_custom_call.1} parent=1 // pred_fallthru
      _
    %s69 = sadd.s32 0, 0
    %s70 = smul.u32 %s69, 16
    %s71 = sadd.s32 %s70, 16
    %p72 = scmp.le.s32.totalorder %s71, 16
    // Predicated region
    $region22: #{tpu_custom_call.1} parent=1 // pred_check
      %p73 = pneg %p72
    $region23: #{tpu_custom_call.1} parent=1 // pred_check_branch
      %75 = sbr.rel (%p73) target = $region25
    $region24: #{tpu_custom_call.1} parent=1 // pred_region
      %v76 = vld [vmem:[#allocation4] sm:$0xff]
      %v77 = vld [vmem:[#allocation4 + $0x8] sm:$0xff]
      %v78 = vld [vmem:[#allocation7] sm:$0xff]
      %v79 = vld [vmem:[#allocation7 + $0x8] sm:$0xff]
      %v80 = vmul.f32 %v76, 0.5
      %v81 = vmul.f32 %v77, 0.5
      %v82 = vtanh.pop %v80
      %v83 = vtanh.pop %v81
      %v84 = vmul.f32 %v82, 0.5
      %v85 = vmul.f32 %v83, 0.5
      %v86 = vadd.f32 %v84, 0.5
      %v87 = vadd.f32 %v85, 0.5
      %v88 = vld [vmem:[#allocation2] sm:$0xff]
      %v89 = vmul.f32 %v86, %v78
      %v90 = vmul.f32 %v87, %v79
      %v91 = vadd.f32 %v89, %v90
      %v92 = vadd.f32 %v88, %v91
      %93 = vst [vmem:[#allocation2] sm:$0xff] %v92
      %v94 = vld [vmem:[#allocation3] sm:$0xff]
      %v95 = vadd.f32 %v86, %v78
      %v96 = vadd.f32 %v87, %v79
      %v97 = vadd.f32 %v95, %v96
      %v98 = vadd.f32 %v94, %v97
      %99 = vst [vmem:[#allocation3] sm:$0xff] %v98
    $region25: #{tpu_custom_call.1} parent=1 // pred_fallthru
      _
    %p100 = scmp.gt.s32.totalorder %s71, 16
    %p101 = scmp.lt.s32.totalorder %s70, 16
    %p102 = pnand %p100, %p101
    %p103 = pneg %p102
    // Predicated region
    $region26: #{tpu_custom_call.1} parent=1 // pred_check
      _
    $region27: #{tpu_custom_call.1} parent=1 // pred_check_branch
      %105 = sbr.rel (%p102) target = $region29
    $region28: #{tpu_custom_call.1} parent=1 // pred_region
      %v106 = vld [vmem:[#allocation4] sm:$0xff]
      %v107 = vld [vmem:[#allocation4 + $0x8] sm:$0xff]
      %v108 = vld [vmem:[#allocation7] sm:$0xff]
      %v109 = vld [vmem:[#allocation7 + $0x8] sm:$0xff]
      %v110 = vmul.f32 %v106, 0.5
      %v111 = vmul.f32 %v107, 0.5
      %v112 = vtanh.pop %v110
      %v113 = vtanh.pop %v111
      %v114 = vmul.f32 %v112, 0.5
      %v115 = vmul.f32 %v113, 0.5
      %v116 = vadd.f32 %v114, 0.5
      %v117 = vadd.f32 %v115, 0.5
      %v118 = vlaneseq
      %v119 = vshrl.u32 %v118, 7
      %v120 = vadd.s32 %v119, 8
      %v121 = vstv %s70
      %v122 = vadd.s32 %v121, %v119
      %v123 = vadd.s32 %v121, %v120
      %v124 = vlaneseq
      %v125 = vand.u32 %v124, 127
      %vm126 = vcmp.lt.s32.totalorder %v122, 16
      %vm127 = vcmp.lt.s32.totalorder %v123, 16
      %vm128 = vcmp.eq.s32.totalorder %v122, 16
      %vm129 = vcmp.eq.s32.totalorder %v123, 16
      %vm130 = vcmp.lt.s32.totalorder %v125, 0
      %vm131 = vmand %vm128, %vm130
      %vm132 = vmand %vm129, %vm130
      %vm133 = vmor %vm126, %vm131
      %vm134 = vmor %vm127, %vm132
      %v135 = vsel %vm133, %v116, 0.0
      %v136 = vsel %vm134, %v117, 0.0
      %v137 = vsel %vm133, %v108, 0.0
      %v138 = vsel %vm134, %v109, 0.0
      %v139 = vld [vmem:[#allocation2] sm:$0xff]
      %v140 = vmul.f32 %v135, %v137
      %v141 = vmul.f32 %v136, %v138
      %v142 = vadd.f32 %v140, %v141
      %v143 = vadd.f32 %v139, %v142
      %144 = vst [vmem:[#allocation2] sm:$0xff] %v143
      %v145 = vld [vmem:[#allocation3] sm:$0xff]
      %v146 = vadd.f32 %v135, %v137
      %v147 = vadd.f32 %v136, %v138
      %v148 = vadd.f32 %v146, %v147
      %v149 = vadd.f32 %v145, %v148
      %150 = vst [vmem:[#allocation3] sm:$0xff] %v149
    $region29: #{tpu_custom_call.1} parent=1 // pred_fallthru
      _
    // Predicated region
    $region30: #{tpu_custom_call.1} parent=1 // pred_check
      %p151 = pneg %p63
    $region31: #{tpu_custom_call.1} parent=1 // pred_check_branch
      %153 = sbr.rel (%p151) target = $region33
    $region32: #{tpu_custom_call.1} parent=1 // pred_region
      %v154 = vld [vmem:[#allocation2] sm:$0xff]
      %v155 = vrot.slane %v154, 4
      %v156 = vadd.f32 %v154, %v155
      %v157 = vrot.slane %v156, 2
      %v158 = vadd.f32 %v156, %v157
      %v159 = vrot.slane %v158, 1
      %v160 = vadd.f32 %v158, %v159
      %161 = vst [vmem:[#allocation9] sm:$0x1] %v160
      %v162 = vld [vmem:[#allocation3] sm:$0xff]
      %v163 = vrot.slane %v162, 4
      %v164 = vadd.f32 %v162, %v163
      %v165 = vrot.slane %v164, 2
      %v166 = vadd.f32 %v164, %v165
      %v167 = vrot.slane %v166, 1
      %v168 = vadd.f32 %v166, %v167
      %169 = vst [vmem:[#allocation10] sm:$0x1] %v168
    $region33: #{tpu_custom_call.1} parent=1 // pred_fallthru
      _
    // Predicated region
    $region34: #{tpu_custom_call.1} parent=1 // pred_check
      _
    $region35: #{tpu_custom_call.1} parent=1 // pred_check_branch
      %171 = sbr.rel (0) target = $region37
    $region36: #{tpu_custom_call.1} parent=1 // pred_region
      %s173 = ssub.s32 16, 16
      %174 = vsyncadd [#allocation6], %s173
      %s176 = sshll.u32 [#allocation9], 4
      %s177 = int_to_ptr.vmem [resolvable:$true] %s176
      %179 = dma.vmem_to_hbm [thread:$0]  %s177, 16, %s2, [#allocation6]
    $region37: #{tpu_custom_call.1} parent=1 // pred_fallthru
      _
    // Predicated region
    $region38: #{tpu_custom_call.1} parent=1 // pred_check
      _
    $region39: #{tpu_custom_call.1} parent=1 // pred_check_branch
      %181 = sbr.rel (0) target = $region41
    $region40: #{tpu_custom_call.1} parent=1 // pred_region
      %s183 = ssub.s32 16, 16
      %184 = vsyncadd [#allocation11], %s183
      %s186 = sshll.u32 [#allocation10], 4
      %s187 = int_to_ptr.vmem [resolvable:$true] %s186
      %189 = dma.vmem_to_hbm [thread:$0]  %s187, 16, %s3, [#allocation11]
    $region41: #{tpu_custom_call.1} parent=1 // pred_fallthru
      _
    // Predicated region
    $region42: #{tpu_custom_call.1} parent=1 // pred_check
      _
    $region43: #{tpu_custom_call.1} parent=1 // pred_check_branch
      %191 = sbr.rel (0) target = $region45
    $region44: #{tpu_custom_call.1} parent=1 // pred_region
      %192 = dma.done [#allocation6], 16
    $region45: #{tpu_custom_call.1} parent=1 // pred_fallthru
      _
    // Predicated region
    $region46: #{tpu_custom_call.1} parent=1 // pred_check
      _
    $region47: #{tpu_custom_call.1} parent=1 // pred_check_branch
      %194 = sbr.rel (0) target = $region49
    $region48: #{tpu_custom_call.1} parent=1 // pred_region
      %195 = dma.done [#allocation11], 16
    $region49: #{tpu_custom_call.1} parent=1 // pred_fallthru
      _
    %196 = vsyncpa [#allocation5], 1
    %197 = vsyncpa [#allocation8], 1
    %198 = vsyncpa [#allocation6], 1
    %199 = vsyncpa [#allocation11], 1

</llo_original>
